<compile_context>
chip_gen: v7x
topology: tpu7x:2x2x1
jax: 0.10.0
libtpu: 0.0.40
codegen_flags: <defaults>
</compile_context>

<pallas_src>
import functools

import jax
import jax.numpy as jnp
from jax import lax
from jax.experimental import pallas as pl
from jax.experimental.pallas import tpu as pltpu

_BN_EPS = 1e-5  # PyTorch BatchNorm1d default


def _round_up(x, m):
    return (x + m - 1) // m * m


def _head_kernel(seq_len, z_ref, w1_ref, b1_ref, w2_ref, b2_ref,
                 ct_ref, y_ref, acc_ref):
    """Grid = (batch_tiles, seq_tiles). seq axis is a resident reduction ("arbitrary")."""
    s = pl.program_id(1)

    @pl.when(s == 0)
    def _():
        acc_ref[...] = jnp.zeros_like(acc_ref)

    # Accumulate the temporal sum in f32 (z may be f32 or bf16 in HBM).
    z = z_ref[...].astype(jnp.float32)                        # (TB, TSEQ, E)
    tseq = z_ref.shape[1]
    if seq_len % tseq:  # ragged seq tail: mask out-of-bounds (garbage) rows
        seq_idx = lax.broadcasted_iota(jnp.int32, (1, tseq, 1), 1) + s * tseq
        z = jnp.where(seq_idx < seq_len, z, 0.0)
    acc_ref[...] += jnp.sum(z, axis=1)                        # (TB, E)

    @pl.when(s == pl.num_programs(1) - 1)
    def _():
        # c_t = mean over seq
        c = acc_ref[...] / float(seq_len)                     # (TB, E) f32
        ct_ref[...] = c.astype(ct_ref.dtype)

        # Linear-1 with eval-mode BatchNorm folded in (bf16 MXU inputs, f32 accum) + ReLU
        h = jnp.dot(c.astype(jnp.bfloat16), w1_ref[...],
                    preferred_element_type=jnp.float32) + b1_ref[...]
        h = jnp.maximum(h, 0.0)

        # Linear-2 (logits)
        y = jnp.dot(h.astype(jnp.bfloat16), w2_ref[...],
                    preferred_element_type=jnp.float32) + b2_ref[...]
        y_ref[...] = y.astype(y_ref.dtype)


def _choose_tiles(bs, seq_len, emb, z_bytes, h_p, n_cls):
    """Pick (row_tile, seq_tile) against a conservative VMEM budget (safe on v5e/v6e/v7x)."""
    budget = 32 << 20                     # variable-buffer budget; well under v7x's 64 MiB
    # Grid-invariant operands (worst case double-buffered) -- weights & biases.
    fixed = 2 * (emb * h_p * 2 + h_p * n_cls * 2 + h_p * 4 + n_cls * 4)
    avail = max(budget - fixed, 1 << 20)
    bs8 = _round_up(bs, 8)

    def per_row(tseq):  # z double-buffer + c_t/y double-buffers + acc scratch, per row
        return 2 * tseq * emb * z_bytes + 3 * emb * 4 + 2 * n_cls * 4

    tb = (avail // per_row(seq_len)) // 8 * 8
    if tb >= 8:
        # Whole sequence per step; cap the row tile (per-step DMA already >> 0.35us overhead).
        return min(tb, 1024, bs8), seq_len
    # Large seq*emb (ViT-like encoder): tile the seq axis, keep a sizeable batch tile.
    tb = min(256, bs8)
    tseq = (avail // (tb * 2 * emb * z_bytes)) // 8 * 8
    tseq = max(8, min(tseq, seq_len))
    return tb, tseq


def baseline_classifier_head(z_t, params):
    """z_t: (bs, seq_len, emb) f32/bf16; returns dict(y_pred, z_t, c_t). Eval-mode BN."""
    bs, seq_len, emb = z_t.shape
    hidden = params["w1"].shape[1]
    n_cls = params["w2"].shape[1]
    h_p = _round_up(hidden, 128)          # MXU/lane-aligned hidden width

    # --- Fold eval-mode BatchNorm1d and the Linear-1 bias into Linear-1 (exact) ---
    scale = params["gamma"] * lax.rsqrt(params["running_var"] + _BN_EPS)
    w1f = (params["w1"].astype(jnp.float32) * scale[None, :])
    b1f = (params["b1"] - params["running_mean"]) * scale + params["beta"]

    # Zero-pad only the tiny hidden dim (exact: ReLU(0)=0 and zero rows of w2 add 0).
    w1p = jnp.zeros((emb, h_p), jnp.bfloat16).at[:, :hidden].set(w1f.astype(jnp.bfloat16))
    b1p = jnp.zeros((1, h_p), jnp.float32).at[0, :hidden].set(b1f.astype(jnp.float32))
    w2p = jnp.zeros((h_p, n_cls), jnp.bfloat16).at[:hidden, :].set(
        params["w2"].astype(jnp.bfloat16))
    b2p = params["b2"].astype(jnp.float32).reshape(1, n_cls)

    tb, tseq = _choose_tiles(bs, seq_len, emb, z_t.dtype.itemsize, h_p, n_cls)
    grid = (pl.cdiv(bs, tb), pl.cdiv(seq_len, tseq))

    const = lambda shape: pl.BlockSpec(shape, lambda i, s, _sh=shape: (0,) * len(_sh))

    c_t, y_pred = pl.pallas_call(
        functools.partial(_head_kernel, seq_len),
        out_shape=(jax.ShapeDtypeStruct((bs, emb), jnp.float32),    # c_t (true width)
                   jax.ShapeDtypeStruct((bs, n_cls), jnp.float32)), # y_pred (true width)
        grid=grid,
        in_specs=[
            # z_t streamed directly from HBM; minor dims = full array dims (no padding).
            pl.BlockSpec((tb, tseq, emb), lambda i, s: (i, s, 0)),
            const((emb, h_p)),   # folded w1 (bf16, resident across grid)
            const((1, h_p)),     # folded b1
            const((h_p, n_cls)), # w2 (bf16)
            const((1, n_cls)),   # b2
        ],
        out_specs=(pl.BlockSpec((tb, emb), lambda i, s: (i, 0)),
                   pl.BlockSpec((tb, n_cls), lambda i, s: (i, 0))),
        scratch_shapes=[pltpu.VMEM((tb, emb), jnp.float32)],   # pooled-sum accumulator
        compiler_params=pltpu.CompilerParams(
            dimension_semantics=("parallel", "arbitrary"),     # batch sharded, seq reduced
            vmem_limit_bytes=48 * 1024 * 1024),                # above 16/32 MiB scoped defaults
    )(z_t, w1p, b1p, w2p, b2p)

    return {"y_pred": y_pred, "z_t": z_t, "c_t": c_t}


def init_params(key, emb_dim, hidden_dim, num_classes):
    """PyTorch-style init: Linear ~ U(-1/sqrt(fan_in), +); BN params randomized for testing."""
    k = jax.random.split(key, 8)
    b1 = 1.0 / (emb_dim ** 0.5)
    b2 = 1.0 / (hidden_dim ** 0.5)
    return {
        "w1": jax.random.uniform(k[0], (emb_dim, hidden_dim), jnp.float32, -b1, b1),
        "b1": jax.random.uniform(k[1], (hidden_dim,), jnp.float32, -b1, b1),
        "gamma": jax.random.uniform(k[2], (hidden_dim,), jnp.float32, 0.5, 1.5),
        "beta": jax.random.normal(k[3], (hidden_dim,), jnp.float32) * 0.1,
        "running_mean": jax.random.normal(k[4], (hidden_dim,), jnp.float32) * 0.1,
        "running_var": jax.random.uniform(k[5], (hidden_dim,), jnp.float32, 0.5, 1.5),
        "w2": jax.random.uniform(k[6], (hidden_dim, num_classes), jnp.float32, -b2, b2),
        "b2": jax.random.uniform(k[7], (num_classes,), jnp.float32, -b2, b2),
    }


def reference_forward(z_t, params):
    """Pure-JAX reference with the same folded-BN / bf16-matmul / f32-accumulate semantics."""
    c_t = jnp.mean(z_t.astype(jnp.float32), axis=1)
    scale = params["gamma"] * lax.rsqrt(params["running_var"] + _BN_EPS)
    w1f = (params["w1"] * scale[None, :]).astype(jnp.bfloat16)
    b1f = (params["b1"] - params["running_mean"]) * scale + params["beta"]
    h = jnp.dot(c_t.astype(jnp.bfloat16), w1f,
                preferred_element_type=jnp.float32) + b1f[None, :]
    h = jnp.maximum(h, 0.0)
    y = jnp.dot(h.astype(jnp.bfloat16), params["w2"].astype(jnp.bfloat16),
                preferred_element_type=jnp.float32) + params["b2"][None, :]
    return {"y_pred": y, "z_t": z_t, "c_t": c_t}


if __name__ == "__main__":
    key = jax.random.PRNGKey(0)
    k_z, k_p = jax.random.split(key)

    # Small shapes consistent with the module's head:
    #   z_t = encoder output (bs, seq_len, emb_dim); mlp hidden=32; num_classes=8.
    #   (Corresponding module input x would be (4, 8, c, h, w), encoded externally.)
    bs, seq_len, emb_dim, hidden_dim, num_classes = 4, 8, 64, 32, 8
    z_t = jax.random.normal(k_z, (bs, seq_len, emb_dim), dtype=jnp.float32)
    params = init_params(k_p, emb_dim, hidden_dim, num_classes)

    out = baseline_classifier_head(z_t, params)
    out = jax.block_until_ready(out)

    ref = reference_forward(z_t, params)
    assert out["y_pred"].shape == (bs, num_classes)
    assert out["c_t"].shape == (bs, emb_dim)
    assert out["z_t"].shape == (bs, seq_len, emb_dim)
    assert jnp.allclose(out["c_t"], ref["c_t"], atol=1e-5, rtol=1e-5), "c_t mismatch"
    assert jnp.allclose(out["y_pred"], ref["y_pred"], atol=2e-3, rtol=2e-3), "y_pred mismatch"

    print("KERNEL_OK")
</pallas_src>

<mosaic_0001>
module attributes {stable_mosaic.version = 11 : i64} {
  func.func @_head_kernel(%arg0: i32, %arg1: i32, %arg2: memref<8x8x64xf32, #tpu.memory_space<vmem>>, %arg3: memref<64x128xbf16, #tpu.memory_space<vmem>>, %arg4: memref<1x128xf32, #tpu.memory_space<vmem>>, %arg5: memref<128x8xbf16, #tpu.memory_space<vmem>>, %arg6: memref<1x8xf32, #tpu.memory_space<vmem>>, %arg7: memref<8x64xf32, #tpu.memory_space<vmem>>, %arg8: memref<8x8xf32, #tpu.memory_space<vmem>>, %arg9: memref<8x64xf32, #tpu.memory_space<vmem>>) attributes {dimension_semantics = [#tpu.dimension_semantics<parallel>, #tpu.dimension_semantics<arbitrary>], iteration_bounds = array<i64: 1, 1>, scalar_prefetch = 0 : i64, scratch_operands = 1 : i64, tpu.core_type = #tpu.core_type<tc>, window_params = [{transform_indices = @transform_0, window_bounds = array<i64: 8, 8, 64>}, {pipeline_mode = #tpu.pipeline_mode<synchronous>, transform_indices = @transform_1, window_bounds = array<i64: 64, 128>}, {pipeline_mode = #tpu.pipeline_mode<synchronous>, transform_indices = @transform_2, window_bounds = array<i64: 1, 128>}, {pipeline_mode = #tpu.pipeline_mode<synchronous>, transform_indices = @transform_3, window_bounds = array<i64: 128, 8>}, {pipeline_mode = #tpu.pipeline_mode<synchronous>, transform_indices = @transform_4, window_bounds = array<i64: 1, 8>}, {transform_indices = @transform_5, window_bounds = array<i64: 8, 64>}, {transform_indices = @transform_6, window_bounds = array<i64: 8, 8>}]} {
    %c0_i32 = arith.constant 0 : i32
    %0 = arith.cmpi eq, %arg1, %c0_i32 : i32
    %1 = arith.extui %0 : i1 to i32
    %c0_i32_0 = arith.constant 0 : i32
    %2 = arith.cmpi ne, %1, %c0_i32_0 : i32
    scf.if %2 {
      %cst_9 = arith.constant 0.000000e+00 : f32
      %11 = vector.broadcast %cst_9 : f32 to vector<8x64xf32>
      %c0_10 = arith.constant 0 : index
      %c0_11 = arith.constant 0 : index
      %12 = vector.load %arg9[%c0_10, %c0_11] : memref<8x64xf32, #tpu.memory_space<vmem>>, vector<8x64xf32>
      tpu.vector_store %arg9[%c0_10, %c0_11], %11 {strides = array<i32>} : memref<8x64xf32, #tpu.memory_space<vmem>>, vector<8x64xf32>,
    } else {
    }
    %c0 = arith.constant 0 : index
    %c0_1 = arith.constant 0 : index
    %c0_2 = arith.constant 0 : index
    %3 = vector.load %arg2[%c0, %c0_1, %c0_2] : memref<8x8x64xf32, #tpu.memory_space<vmem>>, vector<8x8x64xf32>
    %c0_3 = arith.constant 0 : index
    %c0_4 = arith.constant 0 : index
    %4 = vector.load %arg9[%c0_3, %c0_4] : memref<8x64xf32, #tpu.memory_space<vmem>>, vector<8x64xf32>
    %cst = arith.constant dense<0.000000e+00> : vector<8x64xf32>
    %5 = vector.multi_reduction <add>, %3, %cst [1] : vector<8x8x64xf32> to vector<8x64xf32>
    %6 = arith.addf %4, %5 : vector<8x64xf32>
    %c0_5 = arith.constant 0 : index
    %c0_6 = arith.constant 0 : index
    %7 = vector.load %arg9[%c0_5, %c0_6] : memref<8x64xf32, #tpu.memory_space<vmem>>, vector<8x64xf32>
    tpu.vector_store %arg9[%c0_5, %c0_6], %6 {strides = array<i32>} : memref<8x64xf32, #tpu.memory_space<vmem>>, vector<8x64xf32>,
    %c0_i32_7 = arith.constant 0 : i32
    %8 = arith.cmpi eq, %arg1, %c0_i32_7 : i32
    %9 = arith.extui %8 : i1 to i32
    %c0_i32_8 = arith.constant 0 : i32
    %10 = arith.cmpi ne, %9, %c0_i32_8 : i32
    scf.if %10 {
      %c0_9 = arith.constant 0 : index
      %c0_10 = arith.constant 0 : index
      %11 = vector.load %arg9[%c0_9, %c0_10] : memref<8x64xf32, #tpu.memory_space<vmem>>, vector<8x64xf32>
      %cst_11 = arith.constant 8.000000e+00 : f32
      %12 = vector.broadcast %cst_11 : f32 to vector<8x64xf32>
      %13 = arith.divf %11, %12 : vector<8x64xf32>
      %c0_12 = arith.constant 0 : index
      %c0_13 = arith.constant 0 : index
      %14 = vector.load %arg7[%c0_12, %c0_13] : memref<8x64xf32, #tpu.memory_space<vmem>>, vector<8x64xf32>
      tpu.vector_store %arg7[%c0_12, %c0_13], %13 {strides = array<i32>} : memref<8x64xf32, #tpu.memory_space<vmem>>, vector<8x64xf32>,
      %15 = arith.truncf %13 : vector<8x64xf32> to vector<8x64xbf16>
      %c0_14 = arith.constant 0 : index
      %c0_15 = arith.constant 0 : index
      %16 = vector.load %arg3[%c0_14, %c0_15] : memref<64x128xbf16, #tpu.memory_space<vmem>>, vector<64x128xbf16>
      %cst_16 = arith.constant dense<0.000000e+00> : vector<8x128xf32>
      %17 = tpu.matmul %15, %16, %cst_16 {dimension_numbers = #tpu.dot_dimension_numbers<[1], [0], [0], [1], [0, 0, 1, 1], [], []>} : vector<8x64xbf16>, vector<64x128xbf16>, vector<8x128xf32> -> vector<8x128xf32>
      %c0_17 = arith.constant 0 : index
      %c0_18 = arith.constant 0 : index
      %18 = vector.load %arg4[%c0_17, %c0_18] : memref<1x128xf32, #tpu.memory_space<vmem>>, vector<1x128xf32>
      %19 = vector.broadcast %18 : vector<1x128xf32> to vector<8x128xf32>
      %20 = arith.addf %17, %19 : vector<8x128xf32>
      %cst_19 = arith.constant 0.000000e+00 : f32
      %21 = vector.broadcast %cst_19 : f32 to vector<8x128xf32>
      %22 = arith.maximumf %20, %21 : vector<8x128xf32>
      %23 = arith.truncf %22 : vector<8x128xf32> to vector<8x128xbf16>
      %c0_20 = arith.constant 0 : index
      %c0_21 = arith.constant 0 : index
      %24 = vector.load %arg5[%c0_20, %c0_21] : memref<128x8xbf16, #tpu.memory_space<vmem>>, vector<128x8xbf16>
      %cst_22 = arith.constant dense<0.000000e+00> : vector<8x8xf32>
      %25 = tpu.matmul %23, %24, %cst_22 {dimension_numbers = #tpu.dot_dimension_numbers<[1], [0], [0], [1], [0, 0, 1, 1], [], []>} : vector<8x128xbf16>, vector<128x8xbf16>, vector<8x8xf32> -> vector<8x8xf32>
      %c0_23 = arith.constant 0 : index
      %c0_24 = arith.constant 0 : index
      %26 = vector.load %arg6[%c0_23, %c0_24] : memref<1x8xf32, #tpu.memory_space<vmem>>, vector<1x8xf32>
      %27 = vector.broadcast %26 : vector<1x8xf32> to vector<8x8xf32>
      %28 = arith.addf %25, %27 : vector<8x8xf32>
      %c0_25 = arith.constant 0 : index
      %c0_26 = arith.constant 0 : index
      %29 = vector.load %arg8[%c0_25, %c0_26] : memref<8x8xf32, #tpu.memory_space<vmem>>, vector<8x8xf32>
      tpu.vector_store %arg8[%c0_25, %c0_26], %28 {strides = array<i32>} : memref<8x8xf32, #tpu.memory_space<vmem>>, vector<8x8xf32>,
    } else {
    }
    return
  }
  func.func @transform_0(%arg0: i32, %arg1: i32) -> (i32, i32, i32) {
    %c0_i32 = arith.constant 0 : i32
    %c0_i32_0 = arith.constant 0 : i32
    return %arg0, %arg1, %c0_i32 : i32, i32, i32
  }
  func.func @transform_1(%arg0: i32, %arg1: i32) -> (i32, i32) {
    %c0_i32 = arith.constant 0 : i32
    %c0_i32_0 = arith.constant 0 : i32
    %c0_i32_1 = arith.constant 0 : i32
    return %c0_i32, %c0_i32_0 : i32, i32
  }
  func.func @transform_2(%arg0: i32, %arg1: i32) -> (i32, i32) {
    %c0_i32 = arith.constant 0 : i32
    %c0_i32_0 = arith.constant 0 : i32
    %c0_i32_1 = arith.constant 0 : i32
    return %c0_i32, %c0_i32_0 : i32, i32
  }
  func.func @transform_3(%arg0: i32, %arg1: i32) -> (i32, i32) {
    %c0_i32 = arith.constant 0 : i32
    %c0_i32_0 = arith.constant 0 : i32
    %c0_i32_1 = arith.constant 0 : i32
    return %c0_i32, %c0_i32_0 : i32, i32
  }
  func.func @transform_4(%arg0: i32, %arg1: i32) -> (i32, i32) {
    %c0_i32 = arith.constant 0 : i32
    %c0_i32_0 = arith.constant 0 : i32
    %c0_i32_1 = arith.constant 0 : i32
    return %c0_i32, %c0_i32_0 : i32, i32
  }
  func.func @transform_5(%arg0: i32, %arg1: i32) -> (i32, i32) {
    %c0_i32 = arith.constant 0 : i32
    %c0_i32_0 = arith.constant 0 : i32
    return %arg0, %c0_i32 : i32, i32
  }
  func.func @transform_6(%arg0: i32, %arg1: i32) -> (i32, i32) {
    %c0_i32 = arith.constant 0 : i32
    %c0_i32_0 = arith.constant 0 : i32
    return %arg0, %c0_i32 : i32, i32
  }
}

</mosaic_0001>

<llo_original>
// kernel: tpu_custom_call.1
$region0: #{tpu_custom_call.1}
  #allocation0 [shape = 'u32[]', space=smem, size = 0x4, offset = 0x4, fixed_abs, tag = 'smem constant byte address 0x4 - core index']
  #allocation1 [shape = 'u32[144,128]{1,0:T(1,128)}', space=vmem, size = 0x12000, scoped, tag = 'internal scratch']
  #allocation2 [shape = 'f32[8,64]{1,0:T(8,128)}', space=vmem, size = 0x1000, scoped, tag = 'scratch operand']
  %s0 = inlined_call_operand.vmem [shape: f32[4,8,64], index: 0, kind: input, shape index: {}]
  %s1 = inlined_call_operand.vmem [shape: bf16[64,128], index: 1, kind: input, shape index: {}]
  %s2 = inlined_call_operand.vmem [shape: f32[1,128], index: 2, kind: input, shape index: {}]
  %s3 = inlined_call_operand.vmem [shape: bf16[128,8], index: 3, kind: input, shape index: {}]
  %s4 = inlined_call_operand.vmem [shape: f32[1,8], index: 4, kind: input, shape index: {}]
  %s5 = inlined_call_operand.hbm [shape: f32[4,64], index: 5, kind: output, shape index: {0}]
  %s6 = inlined_call_operand.hbm [shape: f32[4,8], index: 6, kind: output, shape index: {1}]
  %7 = xla_tuple %s5, %s6
  %s8 = sld [smem:[#allocation0]]
  $region46: #{tpu_custom_call.1} parent=0
    _
  %s10 = ssub.s32 1, %s8
  %s11 = scalar_select 0, %s10, %s8
  $region1: #{tpu_custom_call.1} parent=0
    #allocation3 [shape = 'u8[4096]{0}', space=vmem, size = 0x1000, scoped, tag = 'output window, operand 0, single buffered']
    #allocation4 [shape = 's32[1]{0}', space=sflag, size = 0x4, scoped, tag = 'scoped memory for tpu_custom_call.1']
    #allocation5 [shape = 'u8[4096]{0}', space=vmem, size = 0x1000, scoped, tag = 'output window, operand 1, single buffered']
    #allocation6 [shape = 's32[1]{0}', space=sflag, size = 0x4, scoped, tag = 'scoped memory for tpu_custom_call.1']
    %12 = vsyncpa [#allocation4], 0
    %13 = vsyncpa [#allocation6], 0
    // Predicated region
    $region2: #{tpu_custom_call.1} parent=1 // pred_check
      _
    $region3: #{tpu_custom_call.1} parent=1 // pred_check_branch
      %15 = sbr.rel (0) target = $region5
    $region4: #{tpu_custom_call.1} parent=1 // pred_region
      _
    $region5: #{tpu_custom_call.1} parent=1 // pred_fallthru
      _
    // Predicated region
    $region6: #{tpu_custom_call.1} parent=1 // pred_check
      _
    $region7: #{tpu_custom_call.1} parent=1 // pred_check_branch
      %17 = sbr.rel (0) target = $region9
    $region8: #{tpu_custom_call.1} parent=1 // pred_region
      _
    $region9: #{tpu_custom_call.1} parent=1 // pred_fallthru
      _
    // Predicated region
    $region10: #{tpu_custom_call.1} parent=1 // pred_check
      _
    $region11: #{tpu_custom_call.1} parent=1 // pred_check_branch
      %19 = sbr.rel (0) target = $region13
    $region12: #{tpu_custom_call.1} parent=1 // pred_region
      _
    $region13: #{tpu_custom_call.1} parent=1 // pred_fallthru
      _
    // Predicated region
    $region14: #{tpu_custom_call.1} parent=1 // pred_check
      _
    $region15: #{tpu_custom_call.1} parent=1 // pred_check_branch
      %21 = sbr.rel (0) target = $region17
    $region16: #{tpu_custom_call.1} parent=1 // pred_region
      _
    $region17: #{tpu_custom_call.1} parent=1 // pred_fallthru
      _
    // Predicated region
    $region18: #{tpu_custom_call.1} parent=1 // pred_check
      _
    $region19: #{tpu_custom_call.1} parent=1 // pred_check_branch
      %23 = sbr.rel (0) target = $region21
    $region20: #{tpu_custom_call.1} parent=1 // pred_region
      _
    $region21: #{tpu_custom_call.1} parent=1 // pred_fallthru
      _
    %p25 = scmp.eq.s32.totalorder 0, 0
    // Predicated region
    $region22: #{tpu_custom_call.1} parent=1 // pred_check
      %p26 = pneg %p25
    $region23: #{tpu_custom_call.1} parent=1 // pred_check_branch
      %28 = sbr.rel (%p26) target = $region25
    $region24: #{tpu_custom_call.1} parent=1 // pred_region
      %vm29 = vcmask 523264
      %30 = vst.msk [vmem:[#allocation2] sm:$0xff] %vm29, 0.0
    $region25: #{tpu_custom_call.1} parent=1 // pred_fallthru
      _
    %v31 = vld [vmem:[%s0] sm:$0xff]
    %v32 = vld [vmem:[%s0 + $0x8] sm:$0xff]
    %v33 = vld [vmem:[%s0 + $0x10] sm:$0xff]
    %v34 = vld [vmem:[%s0 + $0x18] sm:$0xff]
    %v35 = vld [vmem:[%s0 + $0x20] sm:$0xff]
    %v36 = vld [vmem:[%s0 + $0x28] sm:$0xff]
    %v37 = vld [vmem:[%s0 + $0x30] sm:$0xff]
    %v38 = vld [vmem:[%s0 + $0x38] sm:$0xff]
    %v39 = vld [vmem:[#allocation2] sm:$0xff]
    %vm40 = vcmask 523264
    %v41 = vsel %vm40, %v31, 0.0
    %v42 = vrot.slane %v41, 4
    %v43 = vadd.f32 %v41, %v42
    %v44 = vrot.slane %v43, 2
    %v45 = vadd.f32 %v43, %v44
    %v46 = vrot.slane %v45, 1
    %v47 = vadd.f32 %v45, %v46
    %v48 = vsel %vm40, %v32, 0.0
    %v49 = vrot.slane %v48, 4
    %v50 = vadd.f32 %v48, %v49
    %v51 = vrot.slane %v50, 2
    %v52 = vadd.f32 %v50, %v51
    %v53 = vrot.slane %v52, 1
    %v54 = vadd.f32 %v52, %v53
    %v55 = vsel %vm40, %v33, 0.0
    %v56 = vrot.slane %v55, 4
    %v57 = vadd.f32 %v55, %v56
    %v58 = vrot.slane %v57, 2
    %v59 = vadd.f32 %v57, %v58
    %v60 = vrot.slane %v59, 1
    %v61 = vadd.f32 %v59, %v60
    %v62 = vsel %vm40, %v34, 0.0
    %v63 = vrot.slane %v62, 4
    %v64 = vadd.f32 %v62, %v63
    %v65 = vrot.slane %v64, 2
    %v66 = vadd.f32 %v64, %v65
    %v67 = vrot.slane %v66, 1
    %v68 = vadd.f32 %v66, %v67
    %v69 = vsel %vm40, %v35, 0.0
    %v70 = vrot.slane %v69, 4
    %v71 = vadd.f32 %v69, %v70
    %v72 = vrot.slane %v71, 2
    %v73 = vadd.f32 %v71, %v72
    %v74 = vrot.slane %v73, 1
    %v75 = vadd.f32 %v73, %v74
    %v76 = vsel %vm40, %v36, 0.0
    %v77 = vrot.slane %v76, 4
    %v78 = vadd.f32 %v76, %v77
    %v79 = vrot.slane %v78, 2
    %v80 = vadd.f32 %v78, %v79
    %v81 = vrot.slane %v80, 1
    %v82 = vadd.f32 %v80, %v81
    %v83 = vsel %vm40, %v37, 0.0
    %v84 = vrot.slane %v83, 4
    %v85 = vadd.f32 %v83, %v84
    %v86 = vrot.slane %v85, 2
    %v87 = vadd.f32 %v85, %v86
    %v88 = vrot.slane %v87, 1
    %v89 = vadd.f32 %v87, %v88
    %v90 = vsel %vm40, %v38, 0.0
    %v91 = vrot.slane %v90, 4
    %v92 = vadd.f32 %v90, %v91
    %v93 = vrot.slane %v92, 2
    %v94 = vadd.f32 %v92, %v93
    %v95 = vrot.slane %v94, 1
    %v96 = vadd.f32 %v94, %v95
    %vm105 = vcmask 1041409
    %v106 = vsel %vm105, %v54, %v47
    %vm107 = vcmask 1042434
    %v108 = vsel %vm107, %v61, %v106
    %vm109 = vcmask 1043459
    %v110 = vsel %vm109, %v68, %v108
    %vm111 = vcmask 1044484
    %v112 = vsel %vm111, %v75, %v110
    %vm113 = vcmask 1045509
    %v114 = vsel %vm113, %v82, %v112
    %vm115 = vcmask 1046534
    %v116 = vsel %vm115, %v89, %v114
    %vm117 = vcmask 1047559
    %v118 = vsel %vm117, %v96, %v116
    %v120 = vadd.f32 %v39, %v118
    %121 = vst.msk [vmem:[#allocation2] sm:$0xff] %vm40, %v120
    // Predicated region
    $region26: #{tpu_custom_call.1} parent=1 // pred_check
      %p122 = pneg %p25
    $region27: #{tpu_custom_call.1} parent=1 // pred_check_branch
      %124 = sbr.rel (%p122) target = $region29
    $region28: #{tpu_custom_call.1} parent=1 // pred_region
      %v125 = vld [vmem:[#allocation2] sm:$0xff]
      %v126 = vrcp.pop 8.0
      %v127 = vmul.f32 %v125, %v126
      %128 = vst.msk [vmem:[#allocation3] sm:$0xff] %vm40, %v127
      %v129 = vpack.c.bf16 %v127, %v127
      %v130 = vld [vmem:[%s1] sm:$0xf]
      %v131 = vld [vmem:[%s1 + $0x4] sm:$0xf]
      %v132 = vld [vmem:[%s1 + $0x8] sm:$0xf]
      %v133 = vld [vmem:[%s1 + $0xc] sm:$0xf]
      %v134 = vld [vmem:[%s1 + $0x10] sm:$0xf]
      %v135 = vld [vmem:[%s1 + $0x14] sm:$0xf]
      %v136 = vld [vmem:[%s1 + $0x18] sm:$0xf]
      %v137 = vld [vmem:[%s1 + $0x1c] sm:$0xf]
      %v138 = vld [vmem:[%s2] sm:$0x1]
      %v140 = vlaneseq
      %v141 = vshrl.u32 %v140, 7
      %v142 = vsub.s32 0, %v141
      %v143 = vrot.slane %v138, %v142
      %v153 = vunpack.c.l.b16 %v130
      %v154 = vunpack.c.l.b16 %v131
      %v155 = vunpack.c.l.b16 %v132
      %v156 = vunpack.c.l.b16 %v133
      %v157 = vunpack.c.l.b16 %v134
      %v158 = vunpack.c.l.b16 %v135
      %v159 = vunpack.c.l.b16 %v136
      %v160 = vunpack.c.l.b16 %v137
      %v161 = vpack.c.b16 %v154, %v153
      %v162 = vpack.c.b16 %v156, %v155
      %v163 = vpack.c.b16 %v158, %v157
      %v164 = vpack.c.b16 %v160, %v159
      %v170 = vsel %vm40, %v129, 0
      %172 = vmatprep.subr.bf16.mxu0 0
      %173 = vmatpush1.bf16.msra.mxu0 %v161
      %174 = vmatprep.subr.bf16.mxu0 0
      %175 = vmatpush1.bf16.msra.mxu0 %v162
      %176 = vmatprep.subr.bf16.mxu0 0
      %177 = vmatpush1.bf16.msra.mxu0 %v163
      %178 = vmatprep.subr.bf16.mxu0 0
      %179 = vmatpush1.bf16.msra.mxu0 %v164
      %180 = vmatprep.subr.bf16.mxu0 0
      %181 = vmatpush1.bf16.msra.mxu0 0
      %182 = vmatprep.subr.bf16.mxu0 0
      %183 = vmatpush1.bf16.msra.mxu0 0
      %184 = vmatprep.subr.bf16.mxu0 0
      %185 = vmatpush1.bf16.msra.mxu0 0
      %186 = vmatprep.subr.bf16.mxu0 0
      %187 = vmatpush1.bf16.msra.mxu0 0
      %188 = vmatprep.subr.bf16.mxu0 0
      %189 = vmatpush1.bf16.msra.mxu0 0
      %190 = vmatprep.subr.bf16.mxu0 0
      %191 = vmatpush1.bf16.msra.mxu0 0
      %192 = vmatprep.subr.bf16.mxu0 0
      %193 = vmatpush1.bf16.msra.mxu0 0
      %194 = vmatprep.subr.bf16.mxu0 0
      %195 = vmatpush1.bf16.msra.mxu0 0
      %196 = vmatprep.subr.bf16.mxu0 0
      %197 = vmatpush1.bf16.msra.mxu0 0
      %198 = vmatprep.subr.bf16.mxu0 0
      %199 = vmatpush1.bf16.msra.mxu0 0
      %200 = vmatprep.subr.bf16.mxu0 0
      %201 = vmatpush1.bf16.msra.mxu0 0
      %202 = vmatprep.subr.bf16.mxu0 0
      %203 = vmatpush1.bf16.msra.mxu0 0
      %204 = vmatprep.mubr.bf16.mxu0 0
      %205 = vmatmul.mubr.bf16.gmra.mrb[0].mxu0 %v170
      %v206 = vpop.f32.mrb[0].mxu0
      %v207 = vadd.f32 %v143, %v206
      %v208 = vpop.f32.mrb[0].mxu0
      %v209 = vpop.f32.mrb[0].mxu0
      %v210 = vpop.f32.mrb[0].mxu0
      %211 = vdwg.mxu0
      %v212 = vmax.f32 %v207, 0.0
      %v213 = vpack.c.bf16 %v212, %v212
      %v214 = vld [vmem:[%s3] sm:$0xf]
      %v215 = vld [vmem:[%s3 + $0x4] sm:$0xf]
      %v216 = vld [vmem:[%s3 + $0x8] sm:$0xf]
      %v217 = vld [vmem:[%s3 + $0xc] sm:$0xf]
      %v218 = vld [vmem:[%s3 + $0x10] sm:$0xf]
      %v219 = vld [vmem:[%s3 + $0x14] sm:$0xf]
      %v220 = vld [vmem:[%s3 + $0x18] sm:$0xf]
      %v221 = vld [vmem:[%s3 + $0x1c] sm:$0xf]
      %v222 = vld [vmem:[%s3 + $0x20] sm:$0xf]
      %v223 = vld [vmem:[%s3 + $0x24] sm:$0xf]
      %v224 = vld [vmem:[%s3 + $0x28] sm:$0xf]
      %v225 = vld [vmem:[%s3 + $0x2c] sm:$0xf]
      %v226 = vld [vmem:[%s3 + $0x30] sm:$0xf]
      %v227 = vld [vmem:[%s3 + $0x34] sm:$0xf]
      %v228 = vld [vmem:[%s3 + $0x38] sm:$0xf]
      %v229 = vld [vmem:[%s3 + $0x3c] sm:$0xf]
      %v230 = vld [vmem:[%s4] sm:$0x1]
      %v232 = vlaneseq
      %v233 = vshrl.u32 %v232, 7
      %v234 = vsub.s32 0, %v233
      %v235 = vrot.slane %v230, %v234
      %v253 = vunpack.c.l.b16 %v214
      %v254 = vunpack.c.l.b16 %v215
      %v255 = vunpack.c.l.b16 %v216
      %v256 = vunpack.c.l.b16 %v217
      %v257 = vunpack.c.l.b16 %v218
      %v258 = vunpack.c.l.b16 %v219
      %v259 = vunpack.c.l.b16 %v220
      %v260 = vunpack.c.l.b16 %v221
      %v261 = vunpack.c.l.b16 %v222
      %v262 = vunpack.c.l.b16 %v223
      %v263 = vunpack.c.l.b16 %v224
      %v264 = vunpack.c.l.b16 %v225
      %v265 = vunpack.c.l.b16 %v226
      %v266 = vunpack.c.l.b16 %v227
      %v267 = vunpack.c.l.b16 %v228
      %v268 = vunpack.c.l.b16 %v229
      %v269 = vpack.c.b16 %v254, %v253
      %v270 = vpack.c.b16 %v256, %v255
      %v271 = vpack.c.b16 %v258, %v257
      %v272 = vpack.c.b16 %v260, %v259
      %v273 = vpack.c.b16 %v262, %v261
      %v274 = vpack.c.b16 %v264, %v263
      %v275 = vpack.c.b16 %v266, %v265
      %v276 = vpack.c.b16 %v268, %v267
      %285 = vmatprep.subr.bf16.mxu0 0
      %286 = vmatpush1.bf16.msra.mxu0 %v269
      %287 = vmatprep.subr.bf16.mxu0 0
      %288 = vmatpush1.bf16.msra.mxu0 %v270
      %289 = vmatprep.subr.bf16.mxu0 0
      %290 = vmatpush1.bf16.msra.mxu0 %v271
      %291 = vmatprep.subr.bf16.mxu0 0
      %292 = vmatpush1.bf16.msra.mxu0 %v272
      %293 = vmatprep.subr.bf16.mxu0 0
      %294 = vmatpush1.bf16.msra.mxu0 %v273
      %295 = vmatprep.subr.bf16.mxu0 0
      %296 = vmatpush1.bf16.msra.mxu0 %v274
      %297 = vmatprep.subr.bf16.mxu0 0
      %298 = vmatpush1.bf16.msra.mxu0 %v275
      %299 = vmatprep.subr.bf16.mxu0 0
      %300 = vmatpush1.bf16.msra.mxu0 %v276
      %301 = vmatprep.subr.bf16.mxu0 0
      %302 = vmatpush1.bf16.msra.mxu0 0
      %303 = vmatprep.subr.bf16.mxu0 0
      %304 = vmatpush1.bf16.msra.mxu0 0
      %305 = vmatprep.subr.bf16.mxu0 0
      %306 = vmatpush1.bf16.msra.mxu0 0
      %307 = vmatprep.subr.bf16.mxu0 0
      %308 = vmatpush1.bf16.msra.mxu0 0
      %309 = vmatprep.subr.bf16.mxu0 0
      %310 = vmatpush1.bf16.msra.mxu0 0
      %311 = vmatprep.subr.bf16.mxu0 0
      %312 = vmatpush1.bf16.msra.mxu0 0
      %313 = vmatprep.subr.bf16.mxu0 0
      %314 = vmatpush1.bf16.msra.mxu0 0
      %315 = vmatprep.subr.bf16.mxu0 0
      %316 = vmatpush1.bf16.msra.mxu0 0
      %317 = vmatprep.mubr.bf16.mxu0 0
      %318 = vmatmul.mubr.bf16.gmra.mrb[0].mxu0 %v213
      %v319 = vpop.f32.mrb[0].mxu0
      %v320 = vadd.f32 %v235, %v319
      %v321 = vpop.f32.mrb[0].mxu0
      %v322 = vpop.f32.mrb[0].mxu0
      %v323 = vpop.f32.mrb[0].mxu0
      %324 = vdwg.mxu0
      %vm325 = vcmask 64512
      %326 = vst.msk [vmem:[#allocation5] sm:$0xff] %vm325, %v320
    $region29: #{tpu_custom_call.1} parent=1 // pred_fallthru
      _
    // Predicated region
    $region30: #{tpu_custom_call.1} parent=1 // pred_check
      _
    $region31: #{tpu_custom_call.1} parent=1 // pred_check_branch
      %328 = sbr.rel (0) target = $region33
    $region32: #{tpu_custom_call.1} parent=1 // pred_region
      %s330 = ssub.s32 128, 64
      %331 = vsyncadd [#allocation4], %s330
      %s332 = sshll.u32 [#allocation3], 4
      %s333 = int_to_ptr.vmem [resolvable:$true] %s332
      %338 = dma.vmem_to_hbm [thread:$0]  %s333, 64, %s5, [#allocation4], 64, 64, 4
    $region33: #{tpu_custom_call.1} parent=1 // pred_fallthru
      _
    // Predicated region
    $region34: #{tpu_custom_call.1} parent=1 // pred_check
      _
    $region35: #{tpu_custom_call.1} parent=1 // pred_check_branch
      %340 = sbr.rel (0) target = $region37
    $region36: #{tpu_custom_call.1} parent=1 // pred_region
      %s342 = ssub.s32 128, 64
      %343 = vsyncadd [#allocation6], %s342
      %s344 = sshll.u32 [#allocation5], 4
      %s345 = int_to_ptr.vmem [resolvable:$true] %s344
      %350 = dma.vmem_to_hbm [thread:$0]  %s345, 64, %s6, [#allocation6], 64, 64, 4
    $region37: #{tpu_custom_call.1} parent=1 // pred_fallthru
      _
    // Predicated region
    $region38: #{tpu_custom_call.1} parent=1 // pred_check
      _
    $region39: #{tpu_custom_call.1} parent=1 // pred_check_branch
      %352 = sbr.rel (0) target = $region41
    $region40: #{tpu_custom_call.1} parent=1 // pred_region
      %353 = dma.done [#allocation4], 128
    $region41: #{tpu_custom_call.1} parent=1 // pred_fallthru
      _
    // Predicated region
    $region42: #{tpu_custom_call.1} parent=1 // pred_check
      _
    $region43: #{tpu_custom_call.1} parent=1 // pred_check_branch
      %355 = sbr.rel (0) target = $region45
    $region44: #{tpu_custom_call.1} parent=1 // pred_region
      %356 = dma.done [#allocation6], 128
    $region45: #{tpu_custom_call.1} parent=1 // pred_fallthru
      _
    %357 = vsyncpa [#allocation4], 1
    %358 = vsyncpa [#allocation6], 1

</llo_original>
